<compile_context>
chip_gen: v7x
topology: tpu7x:2x2x1
jax: 0.10.0
libtpu: 0.0.40
codegen_flags: <defaults>
</compile_context>

<pallas_src>
import functools

import jax
import jax.numpy as jnp
from jax.experimental import pallas as pl
from jax.experimental.pallas import tpu as pltpu


def _round_up(x, m):
    return ((x + m - 1) // m) * m


def _pick_vmem_limit():
    """~75% of physical VMEM (96 MiB on v5e/v6e, 48 MiB on v7x); 48 MiB fallback."""
    default = 48 * 1024 * 1024
    try:
        info = pltpu.get_tpu_info()
        cap = getattr(info, "vmem_capacity_bytes", None)
        if not cap:
            return default
        return max(default, min(int(cap) * 3 // 4, 100 * 1024 * 1024))
    except Exception:
        return default


_VMEM_LIMIT = _pick_vmem_limit()


def _noisy_linear_kernel(x_ref, n_ref, w_ref, b_ref, o_ref, xn_ref):
    # x_ref, n_ref: (tm, K) f32     w_ref: (K, tn) bf16
    # b_ref: (1, tn) f32            o_ref: (tm, tn) f32
    # xn_ref: VMEM scratch (tm, K) bf16  -- cached (x + noise) for the row tile.
    j = pl.program_id(1)

    # Compute (x + noise) once per row tile (j == 0) and reuse for all column tiles.
    @pl.when(j == 0)
    def _():
        xn_ref[...] = (x_ref[...] + n_ref[...]).astype(jnp.bfloat16)

    y = jnp.dot(xn_ref[...], w_ref[...],
                preferred_element_type=jnp.float32)          # bf16 MXU, f32 accumulate
    y = y + b_ref[...]                                       # f32 bias
    o_ref[...] = jnp.where(y > 0, y, 0.1 * y).astype(o_ref.dtype)   # LeakyReLU(0.1)


def prepare_weights(w, b, *, tn=256):
    """One-time weight prep (hoist out of the hot path): bf16 cast + N padding.

    w : (K, N) float32 (transpose of PyTorch nn.Linear.weight)
    b : (N,)   float32
    Returns (w_p, b_p) with N padded up to a multiple of the effective tn.
    """
    K, N = w.shape
    tn_eff = min(tn, _round_up(N, 128))
    n_pad = _round_up(N, tn_eff)
    w_bf = w.astype(jnp.bfloat16)
    w_p = w_bf if n_pad == N else jnp.pad(w_bf, ((0, 0), (0, n_pad - N)))
    b2 = b.reshape(1, -1).astype(jnp.float32)
    b_p = b2 if n_pad == N else jnp.pad(b2, ((0, 0), (0, n_pad - N)))
    return w_p, b_p


@functools.partial(jax.jit, static_argnames=("out_dim", "tm", "tn"))
def noisy_layer_fwd(x, noise, w_p, b_p, *, out_dim, tm=512, tn=256):
    """Pallas NoisyLayer forward with pre-prepared (padded, bf16) weights.

    x, noise : (M, K) float32   (noise ~ N(0,1), drawn fresh by the caller per fwd)
    w_p      : (K, n_pad) bfloat16   from prepare_weights
    b_p      : (1, n_pad) float32    from prepare_weights
    out_dim  : true N (static)
    """
    M, K = x.shape
    Kw, n_pad = w_p.shape
    assert Kw == K

    tm_eff = min(tm, _round_up(M, 8))
    tn_eff = min(tn, n_pad)
    m_pad = _round_up(M, tm_eff)
    assert n_pad % tn_eff == 0

    # Remainder-row padding (cheap; pad rows are sliced off the output).
    if m_pad != M:
        x = jnp.pad(x, ((0, m_pad - M), (0, 0)))
        noise = jnp.pad(noise, ((0, m_pad - M), (0, 0)))

    grid = (m_pad // tm_eff, n_pad // tn_eff)   # j (columns) is the inner axis

    out = pl.pallas_call(
        _noisy_linear_kernel,
        out_shape=jax.ShapeDtypeStruct((m_pad, n_pad), jnp.float32),
        grid_spec=pltpu.PrefetchScalarGridSpec(
            num_scalar_prefetch=0,
            grid=grid,
            in_specs=[
                pl.BlockSpec((tm_eff, K), lambda i, j: (i, 0)),   # x rows
                pl.BlockSpec((tm_eff, K), lambda i, j: (i, 0)),   # noise rows
                pl.BlockSpec((K, tn_eff), lambda i, j: (0, j)),   # W columns
                pl.BlockSpec((1, tn_eff), lambda i, j: (0, j)),   # bias
            ],
            out_specs=pl.BlockSpec((tm_eff, tn_eff), lambda i, j: (i, j)),
            scratch_shapes=[pltpu.VMEM((tm_eff, K), jnp.bfloat16)],  # (x+noise) cache
        ),
        compiler_params=pltpu.CompilerParams(
            # Rows parallel (v7x megacore shards i only); columns arbitrary so the
            # per-row-tile (x+noise) scratch cache is valid across j.
            dimension_semantics=("parallel", "arbitrary"),
            vmem_limit_bytes=_VMEM_LIMIT,
        ),
    )(x, noise, w_p, b_p)
    return out[:M, :out_dim]


def noisy_layer(x, w, b, key, *, tm=512, tn=256):
    """Convenience wrapper: draws fresh noise from `key` and preps weights.

    NOTE: for repeated calls with the same layer, hoist prepare_weights() out of
    the loop (it re-reads/re-writes the full weight every call otherwise).
    """
    noise = jax.random.normal(key, x.shape, x.dtype)
    w_p, b_p = prepare_weights(w, b, tn=tn)
    return noisy_layer_fwd(x, noise, w_p, b_p, out_dim=w.shape[1], tm=tm, tn=tn)


if __name__ == "__main__":
    key = jax.random.PRNGKey(0)
    k_x, k_w, k_b, k_n = jax.random.split(key, 4)

    batch, input_dim, output_dim = 16, 32, 64

    # nn.Linear-style init: uniform(-1/sqrt(in), 1/sqrt(in)); W stored as (in, out).
    bound = 1.0 / (input_dim ** 0.5)
    w = jax.random.uniform(k_w, (input_dim, output_dim), jnp.float32, -bound, bound)
    b = jax.random.uniform(k_b, (output_dim,), jnp.float32, -bound, bound)
    x = jax.random.normal(k_x, (batch, input_dim), jnp.float32)
    noise = jax.random.normal(k_n, (batch, input_dim), jnp.float32)  # randn_like(x)

    # One-time weight prep (hoisted out of the hot path), then the fused kernel.
    w_p, b_p = prepare_weights(w, b, tn=256)
    out = noisy_layer_fwd(x, noise, w_p, b_p, out_dim=output_dim, tm=512, tn=256)
    out = jax.block_until_ready(out)
    assert out.shape == (batch, output_dim), out.shape

    xn = x + noise

    # Reference matching the kernel's bf16 MXU operands (tight tolerance).
    ref_bf = jnp.dot(xn.astype(jnp.bfloat16), w.astype(jnp.bfloat16),
                     preferred_element_type=jnp.float32) + b[None, :]
    ref_bf = jnp.where(ref_bf > 0, ref_bf, 0.1 * ref_bf)
    assert jnp.allclose(out, ref_bf, atol=2e-3, rtol=2e-3), "mismatch vs bf16 reference"

    # Loose check against pure-f32 math (bf16 operand rounding only).
    ref_f32 = xn @ w + b[None, :]
    ref_f32 = jnp.where(ref_f32 > 0, ref_f32, 0.1 * ref_f32)
    assert jnp.allclose(out, ref_f32, atol=5e-2, rtol=5e-2), "mismatch vs f32 reference"

    # Convenience wrapper with the same key must reproduce the same noise/output.
    out2 = jax.block_until_ready(noisy_layer(x, w, b, k_n))
    assert out2.shape == (batch, output_dim)
    assert jnp.allclose(out, out2, atol=1e-6, rtol=1e-6), "wrapper mismatch"

    print("KERNEL_OK")
</pallas_src>

<mosaic_0001>
module attributes {stable_mosaic.version = 11 : i64} {
  func.func @_noisy_linear_kernel(%arg0: i32, %arg1: i32, %arg2: memref<16x32xf32, #tpu.memory_space<vmem>>, %arg3: memref<16x32xf32, #tpu.memory_space<vmem>>, %arg4: memref<32x128xbf16, #tpu.memory_space<vmem>>, %arg5: memref<1x128xf32, #tpu.memory_space<vmem>>, %arg6: memref<16x128xf32, #tpu.memory_space<vmem>>, %arg7: memref<16x32xbf16, #tpu.memory_space<vmem>>) attributes {dimension_semantics = [#tpu.dimension_semantics<parallel>, #tpu.dimension_semantics<arbitrary>], iteration_bounds = array<i64: 1, 1>, scalar_prefetch = 0 : i64, scratch_operands = 1 : i64, tpu.core_type = #tpu.core_type<tc>, window_params = [{transform_indices = @transform_0, window_bounds = array<i64: 16, 32>}, {transform_indices = @transform_1, window_bounds = array<i64: 16, 32>}, {transform_indices = @transform_2, window_bounds = array<i64: 32, 128>}, {transform_indices = @transform_3, window_bounds = array<i64: 1, 128>}, {transform_indices = @transform_4, window_bounds = array<i64: 16, 128>}]} {
    %c0_i32 = arith.constant 0 : i32
    %0 = arith.cmpi eq, %arg1, %c0_i32 : i32
    %1 = arith.extui %0 : i1 to i32
    %c0_i32_0 = arith.constant 0 : i32
    %2 = arith.cmpi ne, %1, %c0_i32_0 : i32
    scf.if %2 {
      %c0_10 = arith.constant 0 : index
      %c0_11 = arith.constant 0 : index
      %15 = vector.load %arg2[%c0_10, %c0_11] : memref<16x32xf32, #tpu.memory_space<vmem>>, vector<16x32xf32>
      %c0_12 = arith.constant 0 : index
      %c0_13 = arith.constant 0 : index
      %16 = vector.load %arg3[%c0_12, %c0_13] : memref<16x32xf32, #tpu.memory_space<vmem>>, vector<16x32xf32>
      %17 = arith.addf %15, %16 : vector<16x32xf32>
      %18 = arith.truncf %17 : vector<16x32xf32> to vector<16x32xbf16>
      %c0_14 = arith.constant 0 : index
      %c0_15 = arith.constant 0 : index
      %19 = vector.load %arg7[%c0_14, %c0_15] : memref<16x32xbf16, #tpu.memory_space<vmem>>, vector<16x32xbf16>
      tpu.vector_store %arg7[%c0_14, %c0_15], %18 {strides = array<i32>} : memref<16x32xbf16, #tpu.memory_space<vmem>>, vector<16x32xbf16>,
    } else {
    }
    %c0 = arith.constant 0 : index
    %c0_1 = arith.constant 0 : index
    %3 = vector.load %arg7[%c0, %c0_1] : memref<16x32xbf16, #tpu.memory_space<vmem>>, vector<16x32xbf16>
    %c0_2 = arith.constant 0 : index
    %c0_3 = arith.constant 0 : index
    %4 = vector.load %arg4[%c0_2, %c0_3] : memref<32x128xbf16, #tpu.memory_space<vmem>>, vector<32x128xbf16>
    %cst = arith.constant dense<0.000000e+00> : vector<16x128xf32>
    %5 = tpu.matmul %3, %4, %cst {dimension_numbers = #tpu.dot_dimension_numbers<[1], [0], [0], [1], [0, 0, 1, 1], [], []>} : vector<16x32xbf16>, vector<32x128xbf16>, vector<16x128xf32> -> vector<16x128xf32>
    %c0_4 = arith.constant 0 : index
    %c0_5 = arith.constant 0 : index
    %6 = vector.load %arg5[%c0_4, %c0_5] : memref<1x128xf32, #tpu.memory_space<vmem>>, vector<1x128xf32>
    %7 = vector.broadcast %6 : vector<1x128xf32> to vector<16x128xf32>
    %8 = arith.addf %5, %7 : vector<16x128xf32>
    %cst_6 = arith.constant 0.000000e+00 : f32
    %9 = vector.broadcast %cst_6 : f32 to vector<16x128xf32>
    %10 = arith.cmpf ogt, %8, %9 : vector<16x128xf32>
    %cst_7 = arith.constant 1.000000e-01 : f32
    %11 = vector.broadcast %cst_7 : f32 to vector<16x128xf32>
    %12 = arith.mulf %11, %8 : vector<16x128xf32>
    %13 = arith.select %10, %8, %12 : vector<16x128xi1>, vector<16x128xf32>
    %c0_8 = arith.constant 0 : index
    %c0_9 = arith.constant 0 : index
    %14 = vector.load %arg6[%c0_8, %c0_9] : memref<16x128xf32, #tpu.memory_space<vmem>>, vector<16x128xf32>
    tpu.vector_store %arg6[%c0_8, %c0_9], %13 {strides = array<i32>} : memref<16x128xf32, #tpu.memory_space<vmem>>, vector<16x128xf32>,
    return
  }
  func.func @transform_0(%arg0: i32, %arg1: i32) -> (i32, i32) {
    %c0_i32 = arith.constant 0 : i32
    %c0_i32_0 = arith.constant 0 : i32
    return %arg0, %c0_i32 : i32, i32
  }
  func.func @transform_1(%arg0: i32, %arg1: i32) -> (i32, i32) {
    %c0_i32 = arith.constant 0 : i32
    %c0_i32_0 = arith.constant 0 : i32
    return %arg0, %c0_i32 : i32, i32
  }
  func.func @transform_2(%arg0: i32, %arg1: i32) -> (i32, i32) {
    %c0_i32 = arith.constant 0 : i32
    %c0_i32_0 = arith.constant 0 : i32
    return %c0_i32, %arg1 : i32, i32
  }
  func.func @transform_3(%arg0: i32, %arg1: i32) -> (i32, i32) {
    %c0_i32 = arith.constant 0 : i32
    %c0_i32_0 = arith.constant 0 : i32
    return %c0_i32, %arg1 : i32, i32
  }
  func.func @transform_4(%arg0: i32, %arg1: i32) -> (i32, i32) {
    %c0_i32 = arith.constant 0 : i32
    return %arg0, %arg1 : i32, i32
  }
}

</mosaic_0001>

<llo_original>
// kernel: noisy_layer_fwd.1
$region0: #{noisy_layer_fwd.1}
  #allocation0 [shape = 'u32[]', space=smem, size = 0x4, offset = 0x4, fixed_abs, tag = 'smem constant byte address 0x4 - core index']
  #allocation1 [shape = 'u32[144,128]{1,0:T(1,128)}', space=vmem, size = 0x12000, scoped, tag = 'internal scratch']
  #allocation2 [shape = 'bf16[16,32]{1,0:T(16,128)(2,1)}', space=vmem, size = 0x1000, scoped, tag = 'scratch operand']
  %s0 = inlined_call_operand.hbm [shape: f32[16,32], index: 0, kind: input, shape index: {}]
  %s1 = inlined_call_operand.hbm [shape: f32[16,32], index: 1, kind: input, shape index: {}]
  %s2 = inlined_call_operand.hbm [shape: bf16[32,128], index: 2, kind: input, shape index: {}]
  %s3 = inlined_call_operand.vmem [shape: f32[1,128], index: 3, kind: input, shape index: {}]
  %s4 = inlined_call_operand.hbm [shape: f32[16,128], index: 4, kind: output, shape index: {}]
  %s5 = sld [smem:[#allocation0]]
  $region42: #{noisy_layer_fwd.1} parent=0
    _
  %s7 = ssub.s32 1, %s5
  %s8 = scalar_select 0, %s7, %s5
  $region1: #{noisy_layer_fwd.1} parent=0
    #allocation3 [shape = 'u8[8192]{0}', space=vmem, size = 0x2000, scoped, tag = 'input window, operand 0, single buffered']
    #allocation4 [shape = 's32[1]{0}', space=sflag, size = 0x4, scoped, tag = 'scoped memory for noisy_layer_fwd.1']
    #allocation5 [shape = 's32[1]{0}', space=sflag, size = 0x4, scoped, tag = 'scoped memory for noisy_layer_fwd.1']
    #allocation6 [shape = 'u8[8192]{0}', space=vmem, size = 0x2000, scoped, tag = 'input window, operand 1, single buffered']
    #allocation7 [shape = 's32[1]{0}', space=sflag, size = 0x4, scoped, tag = 'scoped memory for noisy_layer_fwd.1']
    #allocation8 [shape = 'u8[8192]{0}', space=vmem, size = 0x2000, scoped, tag = 'input window, operand 2, single buffered']
    #allocation9 [shape = 'u8[8192]{0}', space=vmem, size = 0x2000, scoped, tag = 'output window, operand 0, single buffered']
    %9 = vsyncpa [#allocation4], 0
    %10 = vsyncpa [#allocation7], 0
    %11 = vsyncpa [#allocation5], 0
    // Predicated region
    $region2: #{noisy_layer_fwd.1} parent=1 // pred_check
      _
    $region3: #{noisy_layer_fwd.1} parent=1 // pred_check_branch
      %13 = sbr.rel (0) target = $region5
    $region4: #{noisy_layer_fwd.1} parent=1 // pred_region
      %s15 = ssub.s32 256, 256
      %16 = vsyncadd [#allocation4], %s15
      %s17 = sshll.u32 [#allocation3], 4
      %s18 = int_to_ptr.vmem [resolvable:$true] %s17
      %23 = dma.hbm_to_vmem [thread:$0]  %s0, 256, %s18, [#allocation4], 128, 128, 8
    $region5: #{noisy_layer_fwd.1} parent=1 // pred_fallthru
      _
    // Predicated region
    $region6: #{noisy_layer_fwd.1} parent=1 // pred_check
      _
    $region7: #{noisy_layer_fwd.1} parent=1 // pred_check_branch
      %25 = sbr.rel (0) target = $region9
    $region8: #{noisy_layer_fwd.1} parent=1 // pred_region
      %s27 = ssub.s32 256, 256
      %28 = vsyncadd [#allocation7], %s27
      %s29 = sshll.u32 [#allocation6], 4
      %s30 = int_to_ptr.vmem [resolvable:$true] %s29
      %35 = dma.hbm_to_vmem [thread:$0]  %s1, 256, %s30, [#allocation7], 128, 128, 8
    $region9: #{noisy_layer_fwd.1} parent=1 // pred_fallthru
      _
    // Predicated region
    $region10: #{noisy_layer_fwd.1} parent=1 // pred_check
      _
    $region11: #{noisy_layer_fwd.1} parent=1 // pred_check_branch
      %37 = sbr.rel (0) target = $region13
    $region12: #{noisy_layer_fwd.1} parent=1 // pred_region
      %s39 = ssub.s32 256, 256
      %40 = vsyncadd [#allocation7], %s39
      %s41 = sshll.u32 [#allocation8], 4
      %s42 = int_to_ptr.vmem [resolvable:$true] %s41
      %47 = dma.hbm_to_vmem [thread:$0]  %s2, 256, %s42, [#allocation7], 64, 64, 4
    $region13: #{noisy_layer_fwd.1} parent=1 // pred_fallthru
      _
    // Predicated region
    $region14: #{noisy_layer_fwd.1} parent=1 // pred_check
      _
    $region15: #{noisy_layer_fwd.1} parent=1 // pred_check_branch
      %49 = sbr.rel (0) target = $region17
    $region16: #{noisy_layer_fwd.1} parent=1 // pred_region
      _
    $region17: #{noisy_layer_fwd.1} parent=1 // pred_fallthru
      _
    // Predicated region
    $region18: #{noisy_layer_fwd.1} parent=1 // pred_check
      _
    $region19: #{noisy_layer_fwd.1} parent=1 // pred_check_branch
      %51 = sbr.rel (0) target = $region21
    $region20: #{noisy_layer_fwd.1} parent=1 // pred_region
      %52 = dma.done [#allocation4], 256
    $region21: #{noisy_layer_fwd.1} parent=1 // pred_fallthru
      _
    // Predicated region
    $region22: #{noisy_layer_fwd.1} parent=1 // pred_check
      _
    $region23: #{noisy_layer_fwd.1} parent=1 // pred_check_branch
      %54 = sbr.rel (0) target = $region25
    $region24: #{noisy_layer_fwd.1} parent=1 // pred_region
      %55 = dma.done [#allocation7], 256
    $region25: #{noisy_layer_fwd.1} parent=1 // pred_fallthru
      _
    // Predicated region
    $region26: #{noisy_layer_fwd.1} parent=1 // pred_check
      _
    $region27: #{noisy_layer_fwd.1} parent=1 // pred_check_branch
      %57 = sbr.rel (0) target = $region29
    $region28: #{noisy_layer_fwd.1} parent=1 // pred_region
      %58 = dma.done [#allocation7], 256
    $region29: #{noisy_layer_fwd.1} parent=1 // pred_fallthru
      _
    %p60 = scmp.eq.s32.totalorder 0, 0
    // Predicated region
    $region30: #{noisy_layer_fwd.1} parent=1 // pred_check
      %p61 = pneg %p60
    $region31: #{noisy_layer_fwd.1} parent=1 // pred_check_branch
      %63 = sbr.rel (%p61) target = $region33
    $region32: #{noisy_layer_fwd.1} parent=1 // pred_region
      %v64 = vld [vmem:[#allocation3] sm:$0xff]
      %v65 = vld [vmem:[#allocation3 + $0x8] sm:$0xff]
      %v66 = vld [vmem:[#allocation6] sm:$0xff]
      %v67 = vld [vmem:[#allocation6 + $0x8] sm:$0xff]
      %v68 = vadd.f32 %v64, %v66
      %v69 = vadd.f32 %v65, %v67
      %v70 = vpack.c.bf16 %v69, %v68
      %vm71 = vcmask 261120
      %72 = vst.msk [vmem:[#allocation2] sm:$0xff] %vm71, %v70
    $region33: #{noisy_layer_fwd.1} parent=1 // pred_fallthru
      _
    %v73 = vld [vmem:[#allocation2] sm:$0xff]
    %v74 = vld [vmem:[#allocation8] sm:$0xf]
    %v75 = vld [vmem:[#allocation8 + $0x4] sm:$0xf]
    %v76 = vld [vmem:[#allocation8 + $0x8] sm:$0xf]
    %v77 = vld [vmem:[#allocation8 + $0xc] sm:$0xf]
    %v78 = vld [vmem:[%s3] sm:$0x1]
    %v80 = vlaneseq
    %v81 = vshrl.u32 %v80, 7
    %v82 = vsub.s32 0, %v81
    %v83 = vrot.slane %v78, %v82
    %v89 = vunpack.c.l.b16 %v74
    %v90 = vunpack.c.l.b16 %v75
    %v91 = vunpack.c.l.b16 %v76
    %v92 = vunpack.c.l.b16 %v77
    %v93 = vpack.c.b16 %v90, %v89
    %v94 = vpack.c.b16 %v92, %v91
    %vm97 = vcmask 261120
    %v99 = vsel %vm97, %v73, 0
    %101 = vmatprep.subr.bf16.mxu0 0
    %102 = vmatpush1.bf16.msra.mxu0 %v93
    %103 = vmatprep.subr.bf16.mxu0 0
    %104 = vmatpush1.bf16.msra.mxu0 %v94
    %105 = vmatprep.subr.bf16.mxu0 0
    %106 = vmatpush1.bf16.msra.mxu0 0
    %107 = vmatprep.subr.bf16.mxu0 0
    %108 = vmatpush1.bf16.msra.mxu0 0
    %109 = vmatprep.subr.bf16.mxu0 0
    %110 = vmatpush1.bf16.msra.mxu0 0
    %111 = vmatprep.subr.bf16.mxu0 0
    %112 = vmatpush1.bf16.msra.mxu0 0
    %113 = vmatprep.subr.bf16.mxu0 0
    %114 = vmatpush1.bf16.msra.mxu0 0
    %115 = vmatprep.subr.bf16.mxu0 0
    %116 = vmatpush1.bf16.msra.mxu0 0
    %117 = vmatprep.subr.bf16.mxu0 0
    %118 = vmatpush1.bf16.msra.mxu0 0
    %119 = vmatprep.subr.bf16.mxu0 0
    %120 = vmatpush1.bf16.msra.mxu0 0
    %121 = vmatprep.subr.bf16.mxu0 0
    %122 = vmatpush1.bf16.msra.mxu0 0
    %123 = vmatprep.subr.bf16.mxu0 0
    %124 = vmatpush1.bf16.msra.mxu0 0
    %125 = vmatprep.subr.bf16.mxu0 0
    %126 = vmatpush1.bf16.msra.mxu0 0
    %127 = vmatprep.subr.bf16.mxu0 0
    %128 = vmatpush1.bf16.msra.mxu0 0
    %129 = vmatprep.subr.bf16.mxu0 0
    %130 = vmatpush1.bf16.msra.mxu0 0
    %131 = vmatprep.subr.bf16.mxu0 0
    %132 = vmatpush1.bf16.msra.mxu0 0
    %133 = vmatprep.mubr.bf16.mxu0 0
    %134 = vmatmul.mubr.bf16.gmra.mrb[0].mxu0 %v99
    %v135 = vpop.f32.mrb[0].mxu0
    %v136 = vadd.f32 %v83, %v135
    %v137 = vpop.f32.mrb[0].mxu0
    %v138 = vpop.f32.mrb[0].mxu0
    %v139 = vadd.f32 %v83, %v138
    %v140 = vpop.f32.mrb[0].mxu0
    %141 = vdwg.mxu0
    %vm142 = vcmp.gt.f32.partialorder %v136, 0.0
    %vm143 = vcmp.gt.f32.partialorder %v139, 0.0
    %v144 = vmul.f32 %v136, 0.1
    %v145 = vmul.f32 %v139, 0.1
    %v146 = vsel %vm142, %v136, %v144
    %v147 = vsel %vm143, %v139, %v145
    %148 = vst [vmem:[#allocation9] sm:$0xff] %v146
    %149 = vst [vmem:[#allocation9 + $0x8] sm:$0xff] %v147
    // Predicated region
    $region34: #{noisy_layer_fwd.1} parent=1 // pred_check
      _
    $region35: #{noisy_layer_fwd.1} parent=1 // pred_check_branch
      %151 = sbr.rel (0) target = $region37
    $region36: #{noisy_layer_fwd.1} parent=1 // pred_region
      %s153 = ssub.s32 256, 256
      %154 = vsyncadd [#allocation5], %s153
      %s155 = sshll.u32 [#allocation9], 4
      %s156 = int_to_ptr.vmem [resolvable:$true] %s155
      %161 = dma.vmem_to_hbm [thread:$0]  %s156, 256, %s4, [#allocation5], 128, 128, 8
    $region37: #{noisy_layer_fwd.1} parent=1 // pred_fallthru
      _
    // Predicated region
    $region38: #{noisy_layer_fwd.1} parent=1 // pred_check
      _
    $region39: #{noisy_layer_fwd.1} parent=1 // pred_check_branch
      %163 = sbr.rel (0) target = $region41
    $region40: #{noisy_layer_fwd.1} parent=1 // pred_region
      %164 = dma.done [#allocation5], 256
    $region41: #{noisy_layer_fwd.1} parent=1 // pred_fallthru
      _
    %165 = vsyncpa [#allocation4], 1
    %166 = vsyncpa [#allocation7], 1
    %167 = vsyncpa [#allocation5], 1

</llo_original>
